<compile_context>
chip_gen: v7x
topology: tpu7x:2x2x1
jax: 0.10.0
libtpu: 0.0.40
codegen_flags: <defaults>
</compile_context>

<pallas_src>
import jax
import jax.numpy as jnp
from jax import lax
from jax.experimental import pallas as pl
from jax.experimental.pallas import tpu as pltpu


def _round_up(x, m):
    return (x + m - 1) // m * m


def _concate_kernel(x_ref, oh_ref, w_lm_ref, w_x_ref, bias_ref, o_ref):
    # x_ref:    (TILE_M, hidden)   activation row tile
    # oh_ref:   (TILE_M, onehot)   onehot row tile
    # w_lm_ref: (N_pad, hidden)    Linear weight, PyTorch (out, in) layout
    # w_x_ref:  (N_pad, onehot)    Linear weight, PyTorch (out, in) layout
    # bias_ref: (1, N_pad)         f32 bias (zero-padded)
    # o_ref:    (TILE_M, N_pad)
    #
    # Contract on the in-features axis of both operands (x @ W^T) directly via
    # dot_general so no transposed copy of the weights is ever materialized.
    dn = (((1,), (1,)), ((), ()))
    acc = lax.dot_general(x_ref[...], w_lm_ref[...], dn,
                          preferred_element_type=jnp.float32)
    acc = acc + lax.dot_general(oh_ref[...], w_x_ref[...], dn,
                                preferred_element_type=jnp.float32)
    o_ref[...] = (acc + bias_ref[...]).astype(o_ref.dtype)


def concate_forward(bert_out, onehot, w_lm, w_x, bias, *, tile_m=512,
                    compute_dtype=None):
    """bert_out: (B, S, hidden); onehot: (B, S, onehot); w_lm: (out, hidden);
    w_x: (out, onehot); bias: (1, out).  Returns (B, S, out)."""
    B, S, hidden = bert_out.shape
    onehot_size = onehot.shape[-1]
    output_size = w_lm.shape[0]
    M = B * S
    out_dtype = bert_out.dtype

    x2d = bert_out.reshape(M, hidden)
    oh2d = onehot.reshape(M, onehot_size)

    if compute_dtype is not None:
        # bf16 operands on v6e/v7x: half the HBM/VMEM bytes, bf16-native MXU.
        x2d = x2d.astype(compute_dtype)
        oh2d = oh2d.astype(compute_dtype)
        w_lm = w_lm.astype(compute_dtype)
        w_x = w_x.astype(compute_dtype)

    # Lane-dense output: pad out-features up to a multiple of 128.  Padding the
    # tiny weights/bias is essentially free and done once per call.
    n_pad = _round_up(output_size, 128)
    if n_pad != output_size:
        w_lm = jnp.pad(w_lm, ((0, n_pad - output_size), (0, 0)))
        w_x = jnp.pad(w_x, ((0, n_pad - output_size), (0, 0)))
        bias = jnp.pad(bias, ((0, 0), (0, n_pad - output_size)))
    bias = bias.astype(jnp.float32)

    # Clamp the row tile for tiny problems (keep it a multiple of 8 sublanes).
    # VMEM per step (f32, tile_m=512, n_pad=128): 2x(256K x + 58K oh + 256K out)
    # double-buffered + ~130K resident weights  ~= 1.8 MiB  <<  64 MiB (v7x).
    tile_m = max(8, min(tile_m, _round_up(M, 8)))
    grid = (pl.cdiv(M, tile_m),)

    out2d = pl.pallas_call(
        _concate_kernel,
        out_shape=jax.ShapeDtypeStruct((M, n_pad), out_dtype),
        grid=grid,
        in_specs=[
            pl.BlockSpec((tile_m, hidden), lambda i: (i, 0)),       # x rows
            pl.BlockSpec((tile_m, onehot_size), lambda i: (i, 0)),  # onehot rows
            pl.BlockSpec((n_pad, hidden), lambda i: (0, 0)),        # W_LM (resident)
            pl.BlockSpec((n_pad, onehot_size), lambda i: (0, 0)),   # W_x  (resident)
            pl.BlockSpec((1, n_pad), lambda i: (0, 0)),             # bias (resident)
        ],
        out_specs=pl.BlockSpec((tile_m, n_pad), lambda i: (i, 0)),
        compiler_params=pltpu.CompilerParams(
            # Row tiles are independent -> shard across both TCs on v7x.
            dimension_semantics=("parallel",),
        ),
    )(x2d, oh2d, w_lm, w_x, bias)

    if n_pad != output_size:
        out2d = out2d[:, :output_size]
    return out2d.reshape(B, S, output_size)


if __name__ == "__main__":
    # Module hyperparameters (match PyTorch defaults)
    output_size = 32
    hidden_size = 128
    onehot_size = 29

    # Small problem size
    B, S = 2, 8

    key = jax.random.PRNGKey(0)
    k_x, k_oh, k_wlm, k_wx, k_b = jax.random.split(key, 5)

    bert_out = jax.random.normal(k_x, (B, S, hidden_size), dtype=jnp.float32)
    onehot = jax.random.normal(k_oh, (B, S, onehot_size), dtype=jnp.float32)

    # Deterministic parameter init (nn.Linear weight shape is (out, in))
    w_lm = jax.random.normal(k_wlm, (output_size, hidden_size), dtype=jnp.float32) * 0.05
    w_x = jax.random.normal(k_wx, (output_size, onehot_size), dtype=jnp.float32) * 0.05
    bias = jax.random.normal(k_b, (1, output_size), dtype=jnp.float32)

    out = concate_forward(bert_out, onehot, w_lm, w_x, bias)
    out = jax.block_until_ready(out)

    # Reference check in plain JAX
    ref = bert_out @ w_lm.T + onehot @ w_x.T + bias
    assert out.shape == (B, S, output_size)
    assert jnp.allclose(out, ref, atol=1e-4, rtol=1e-4), float(jnp.abs(out - ref).max())

    print("KERNEL_OK")
</pallas_src>

<mosaic_0001>
module attributes {stable_mosaic.version = 11 : i64} {
  func.func @_concate_kernel(%arg0: i32, %arg1: memref<16x128xf32, #tpu.memory_space<vmem>>, %arg2: memref<16x29xf32, #tpu.memory_space<vmem>>, %arg3: memref<128x128xf32, #tpu.memory_space<vmem>>, %arg4: memref<128x29xf32, #tpu.memory_space<vmem>>, %arg5: memref<1x128xf32, #tpu.memory_space<vmem>>, %arg6: memref<16x128xf32, #tpu.memory_space<vmem>>) attributes {dimension_semantics = [#tpu.dimension_semantics<parallel>], iteration_bounds = array<i64: 1>, scalar_prefetch = 0 : i64, scratch_operands = 0 : i64, tpu.core_type = #tpu.core_type<tc>, window_params = [{transform_indices = @transform_0, window_bounds = array<i64: 16, 128>}, {transform_indices = @transform_1, window_bounds = array<i64: 16, 29>}, {pipeline_mode = #tpu.pipeline_mode<synchronous>, transform_indices = @transform_2, window_bounds = array<i64: 128, 128>}, {pipeline_mode = #tpu.pipeline_mode<synchronous>, transform_indices = @transform_3, window_bounds = array<i64: 128, 29>}, {pipeline_mode = #tpu.pipeline_mode<synchronous>, transform_indices = @transform_4, window_bounds = array<i64: 1, 128>}, {transform_indices = @transform_5, window_bounds = array<i64: 16, 128>}]} {
    %c0 = arith.constant 0 : index
    %c0_0 = arith.constant 0 : index
    %0 = vector.load %arg1[%c0, %c0_0] : memref<16x128xf32, #tpu.memory_space<vmem>>, vector<16x128xf32>
    %c0_1 = arith.constant 0 : index
    %c0_2 = arith.constant 0 : index
    %1 = vector.load %arg3[%c0_1, %c0_2] : memref<128x128xf32, #tpu.memory_space<vmem>>, vector<128x128xf32>
    %cst = arith.constant dense<0.000000e+00> : vector<16x128xf32>
    %2 = tpu.matmul %0, %1, %cst {dimension_numbers = #tpu.dot_dimension_numbers<[1], [1], [0], [0], [0, 0, 1, 0], [], []>} : vector<16x128xf32>, vector<128x128xf32>, vector<16x128xf32> -> vector<16x128xf32>
    %c0_3 = arith.constant 0 : index
    %c0_4 = arith.constant 0 : index
    %3 = vector.load %arg2[%c0_3, %c0_4] : memref<16x29xf32, #tpu.memory_space<vmem>>, vector<16x29xf32>
    %c0_5 = arith.constant 0 : index
    %c0_6 = arith.constant 0 : index
    %4 = vector.load %arg4[%c0_5, %c0_6] : memref<128x29xf32, #tpu.memory_space<vmem>>, vector<128x29xf32>
    %cst_7 = arith.constant dense<0.000000e+00> : vector<16x128xf32>
    %5 = tpu.matmul %3, %4, %cst_7 {dimension_numbers = #tpu.dot_dimension_numbers<[1], [1], [0], [0], [0, 0, 1, 0], [], []>} : vector<16x29xf32>, vector<128x29xf32>, vector<16x128xf32> -> vector<16x128xf32>
    %6 = arith.addf %2, %5 : vector<16x128xf32>
    %c0_8 = arith.constant 0 : index
    %c0_9 = arith.constant 0 : index
    %7 = vector.load %arg5[%c0_8, %c0_9] : memref<1x128xf32, #tpu.memory_space<vmem>>, vector<1x128xf32>
    %8 = vector.broadcast %7 : vector<1x128xf32> to vector<16x128xf32>
    %9 = arith.addf %6, %8 : vector<16x128xf32>
    %c0_10 = arith.constant 0 : index
    %c0_11 = arith.constant 0 : index
    %10 = vector.load %arg6[%c0_10, %c0_11] : memref<16x128xf32, #tpu.memory_space<vmem>>, vector<16x128xf32>
    tpu.vector_store %arg6[%c0_10, %c0_11], %9 {strides = array<i32>} : memref<16x128xf32, #tpu.memory_space<vmem>>, vector<16x128xf32>,
    return
  }
  func.func @transform_0(%arg0: i32) -> (i32, i32) {
    %c0_i32 = arith.constant 0 : i32
    %c0_i32_0 = arith.constant 0 : i32
    return %arg0, %c0_i32 : i32, i32
  }
  func.func @transform_1(%arg0: i32) -> (i32, i32) {
    %c0_i32 = arith.constant 0 : i32
    %c0_i32_0 = arith.constant 0 : i32
    return %arg0, %c0_i32 : i32, i32
  }
  func.func @transform_2(%arg0: i32) -> (i32, i32) {
    %c0_i32 = arith.constant 0 : i32
    %c0_i32_0 = arith.constant 0 : i32
    %c0_i32_1 = arith.constant 0 : i32
    return %c0_i32, %c0_i32_0 : i32, i32
  }
  func.func @transform_3(%arg0: i32) -> (i32, i32) {
    %c0_i32 = arith.constant 0 : i32
    %c0_i32_0 = arith.constant 0 : i32
    %c0_i32_1 = arith.constant 0 : i32
    return %c0_i32, %c0_i32_0 : i32, i32
  }
  func.func @transform_4(%arg0: i32) -> (i32, i32) {
    %c0_i32 = arith.constant 0 : i32
    %c0_i32_0 = arith.constant 0 : i32
    %c0_i32_1 = arith.constant 0 : i32
    return %c0_i32, %c0_i32_0 : i32, i32
  }
  func.func @transform_5(%arg0: i32) -> (i32, i32) {
    %c0_i32 = arith.constant 0 : i32
    %c0_i32_0 = arith.constant 0 : i32
    return %arg0, %c0_i32 : i32, i32
  }
}

</mosaic_0001>

<llo_original>
// kernel: tpu_custom_call.1
$region0: #{tpu_custom_call.1}
  #allocation0 [shape = 'u32[]', space=smem, size = 0x4, offset = 0x4, fixed_abs, tag = 'smem constant byte address 0x4 - core index']
  #allocation1 [shape = 'u32[144,128]{1,0:T(1,128)}', space=vmem, size = 0x12000, scoped, tag = 'internal scratch']
  %s0 = inlined_call_operand.vmem [shape: f32[16,128], index: 0, kind: input, shape index: {}]
  %s1 = inlined_call_operand.vmem [shape: f32[16,29], index: 1, kind: input, shape index: {}]
  %s2 = inlined_call_operand.vmem [shape: f32[128,128], index: 2, kind: input, shape index: {}]
  %s3 = inlined_call_operand.vmem [shape: f32[128,29], index: 3, kind: input, shape index: {}]
  %s4 = inlined_call_operand.vmem [shape: f32[1,128], index: 4, kind: input, shape index: {}]
  %s5 = inlined_call_operand.hbm [shape: f32[16,128], index: 5, kind: output, shape index: {}]
  %s6 = sld [smem:[#allocation0]]
  $region30: #{tpu_custom_call.1} parent=0
    _
  %s8 = ssub.s32 1, %s6
  %s9 = scalar_select 0, %s8, %s6
  $region1: #{tpu_custom_call.1} parent=0
    #allocation2 [shape = 'u8[8192]{0}', space=vmem, size = 0x2000, scoped, tag = 'output window, operand 0, single buffered']
    #allocation3 [shape = 's32[1]{0}', space=sflag, size = 0x4, scoped, tag = 'scoped memory for tpu_custom_call.1']
    %10 = vsyncpa [#allocation3], 0
    // Predicated region
    $region2: #{tpu_custom_call.1} parent=1 // pred_check
      _
    $region3: #{tpu_custom_call.1} parent=1 // pred_check_branch
      %12 = sbr.rel (0) target = $region5
    $region4: #{tpu_custom_call.1} parent=1 // pred_region
      _
    $region5: #{tpu_custom_call.1} parent=1 // pred_fallthru
      _
    // Predicated region
    $region6: #{tpu_custom_call.1} parent=1 // pred_check
      _
    $region7: #{tpu_custom_call.1} parent=1 // pred_check_branch
      %14 = sbr.rel (0) target = $region9
    $region8: #{tpu_custom_call.1} parent=1 // pred_region
      _
    $region9: #{tpu_custom_call.1} parent=1 // pred_fallthru
      _
    // Predicated region
    $region10: #{tpu_custom_call.1} parent=1 // pred_check
      _
    $region11: #{tpu_custom_call.1} parent=1 // pred_check_branch
      %16 = sbr.rel (0) target = $region13
    $region12: #{tpu_custom_call.1} parent=1 // pred_region
      _
    $region13: #{tpu_custom_call.1} parent=1 // pred_fallthru
      _
    // Predicated region
    $region14: #{tpu_custom_call.1} parent=1 // pred_check
      _
    $region15: #{tpu_custom_call.1} parent=1 // pred_check_branch
      %18 = sbr.rel (0) target = $region17
    $region16: #{tpu_custom_call.1} parent=1 // pred_region
      _
    $region17: #{tpu_custom_call.1} parent=1 // pred_fallthru
      _
    // Predicated region
    $region18: #{tpu_custom_call.1} parent=1 // pred_check
      _
    $region19: #{tpu_custom_call.1} parent=1 // pred_check_branch
      %20 = sbr.rel (0) target = $region21
    $region20: #{tpu_custom_call.1} parent=1 // pred_region
      _
    $region21: #{tpu_custom_call.1} parent=1 // pred_fallthru
      _
    %v21 = vld [vmem:[%s0] sm:$0xff]
    %v22 = vld [vmem:[%s0 + $0x8] sm:$0xff]
    %v23 = vld [vmem:[%s2] sm:$0xff]
    %v24 = vld [vmem:[%s2 + $0x8] sm:$0xff]
    %v25 = vld [vmem:[%s2 + $0x10] sm:$0xff]
    %v26 = vld [vmem:[%s2 + $0x18] sm:$0xff]
    %v27 = vld [vmem:[%s2 + $0x20] sm:$0xff]
    %v28 = vld [vmem:[%s2 + $0x28] sm:$0xff]
    %v29 = vld [vmem:[%s2 + $0x30] sm:$0xff]
    %v30 = vld [vmem:[%s2 + $0x38] sm:$0xff]
    %v31 = vld [vmem:[%s2 + $0x40] sm:$0xff]
    %v32 = vld [vmem:[%s2 + $0x48] sm:$0xff]
    %v33 = vld [vmem:[%s2 + $0x50] sm:$0xff]
    %v34 = vld [vmem:[%s2 + $0x58] sm:$0xff]
    %v35 = vld [vmem:[%s2 + $0x60] sm:$0xff]
    %v36 = vld [vmem:[%s2 + $0x68] sm:$0xff]
    %v37 = vld [vmem:[%s2 + $0x70] sm:$0xff]
    %v38 = vld [vmem:[%s2 + $0x78] sm:$0xff]
    %v39 = vld [vmem:[%s1] sm:$0xff]
    %v40 = vld [vmem:[%s1 + $0x8] sm:$0xff]
    %v41 = vld [vmem:[%s3] sm:$0xff]
    %v42 = vld [vmem:[%s3 + $0x8] sm:$0xff]
    %v43 = vld [vmem:[%s3 + $0x10] sm:$0xff]
    %v44 = vld [vmem:[%s3 + $0x18] sm:$0xff]
    %v45 = vld [vmem:[%s3 + $0x20] sm:$0xff]
    %v46 = vld [vmem:[%s3 + $0x28] sm:$0xff]
    %v47 = vld [vmem:[%s3 + $0x30] sm:$0xff]
    %v48 = vld [vmem:[%s3 + $0x38] sm:$0xff]
    %v49 = vld [vmem:[%s3 + $0x40] sm:$0xff]
    %v50 = vld [vmem:[%s3 + $0x48] sm:$0xff]
    %v51 = vld [vmem:[%s3 + $0x50] sm:$0xff]
    %v52 = vld [vmem:[%s3 + $0x58] sm:$0xff]
    %v53 = vld [vmem:[%s3 + $0x60] sm:$0xff]
    %v54 = vld [vmem:[%s3 + $0x68] sm:$0xff]
    %v55 = vld [vmem:[%s3 + $0x70] sm:$0xff]
    %v56 = vld [vmem:[%s3 + $0x78] sm:$0xff]
    %vm57 = vcmask 236544
    %v59 = vsel %vm57, %v39, 0
    %v62 = vsel %vm57, %v40, 0
    %v65 = vsel %vm57, %v41, 0
    %v68 = vsel %vm57, %v42, 0
    %v71 = vsel %vm57, %v43, 0
    %v74 = vsel %vm57, %v44, 0
    %v77 = vsel %vm57, %v45, 0
    %v80 = vsel %vm57, %v46, 0
    %v83 = vsel %vm57, %v47, 0
    %v86 = vsel %vm57, %v48, 0
    %v89 = vsel %vm57, %v49, 0
    %v92 = vsel %vm57, %v50, 0
    %v95 = vsel %vm57, %v51, 0
    %v98 = vsel %vm57, %v52, 0
    %v101 = vsel %vm57, %v53, 0
    %v104 = vsel %vm57, %v54, 0
    %v107 = vsel %vm57, %v55, 0
    %v110 = vsel %vm57, %v56, 0
    %112 = vmatprep.subr.mxu0 0.0
    %113 = vmatpush1.xpose.msra.mxu0 %v65
    %114 = vmatprep.subr.mxu0 0.0
    %115 = vmatpush1.xpose.msra.mxu0 %v68
    %116 = vmatprep.subr.mxu0 0.0
    %117 = vmatpush1.xpose.msra.mxu0 %v71
    %118 = vmatprep.subr.mxu0 0.0
    %119 = vmatpush1.xpose.msra.mxu0 %v74
    %120 = vmatprep.subr.mxu0 0.0
    %121 = vmatpush1.xpose.msra.mxu0 %v77
    %122 = vmatprep.subr.mxu0 0.0
    %123 = vmatpush1.xpose.msra.mxu0 %v80
    %124 = vmatprep.subr.mxu0 0.0
    %125 = vmatpush1.xpose.msra.mxu0 %v83
    %126 = vmatprep.subr.mxu0 0.0
    %127 = vmatpush1.xpose.msra.mxu0 %v86
    %128 = vmatprep.subr.mxu0 0.0
    %129 = vmatpush1.xpose.msra.mxu0 %v89
    %130 = vmatprep.subr.mxu0 0.0
    %131 = vmatpush1.xpose.msra.mxu0 %v92
    %132 = vmatprep.subr.mxu0 0.0
    %133 = vmatpush1.xpose.msra.mxu0 %v95
    %134 = vmatprep.subr.mxu0 0.0
    %135 = vmatpush1.xpose.msra.mxu0 %v98
    %136 = vmatprep.subr.mxu0 0.0
    %137 = vmatpush1.xpose.msra.mxu0 %v101
    %138 = vmatprep.subr.mxu0 0.0
    %139 = vmatpush1.xpose.msra.mxu0 %v104
    %140 = vmatprep.subr.mxu0 0.0
    %141 = vmatpush1.xpose.msra.mxu0 %v107
    %142 = vmatprep.subr.mxu0 0.0
    %143 = vmatpush1.xpose.msra.mxu0 %v110
    %144 = vmatprep.subr.mxu0 0.0
    %145 = vmatpush1.xpose.msra.mxu0 0.0
    %146 = vmatprep.subr.mxu0 0.0
    %147 = vmatpush1.xpose.msra.mxu0 0.0
    %148 = vmatprep.subr.mxu0 0.0
    %149 = vmatpush1.xpose.msra.mxu0 0.0
    %150 = vmatprep.subr.mxu0 0.0
    %151 = vmatpush1.xpose.msra.mxu0 0.0
    %152 = vmatprep.subr.mxu0 0.0
    %153 = vmatpush1.xpose.msra.mxu0 0.0
    %154 = vmatprep.subr.mxu0 0.0
    %155 = vmatpush1.xpose.msra.mxu0 0.0
    %156 = vmatprep.subr.mxu0 0.0
    %157 = vmatpush1.xpose.msra.mxu0 0.0
    %158 = vmatprep.subr.mxu0 0.0
    %159 = vmatpush1.xpose.msra.mxu0 0.0
    %160 = vmatprep.subr.mxu0 0.0
    %161 = vmatpush1.xpose.msra.mxu0 0.0
    %162 = vmatprep.subr.mxu0 0.0
    %163 = vmatpush1.xpose.msra.mxu0 0.0
    %164 = vmatprep.subr.mxu0 0.0
    %165 = vmatpush1.xpose.msra.mxu0 0.0
    %166 = vmatprep.subr.mxu0 0.0
    %167 = vmatpush1.xpose.msra.mxu0 0.0
    %168 = vmatprep.subr.mxu0 0.0
    %169 = vmatpush1.xpose.msra.mxu0 0.0
    %170 = vmatprep.subr.mxu0 0.0
    %171 = vmatpush1.xpose.msra.mxu0 0.0
    %172 = vmatprep.subr.mxu0 0.0
    %173 = vmatpush1.xpose.msra.mxu0 0.0
    %174 = vmatprep.subr.mxu0 0.0
    %175 = vmatpush1.xpose.msra.mxu0 0.0
    %176 = vmatprep.mubr.f32.mxu0 0.0
    %177 = vmatmul.mubr.f32.gmra.mrb[0].mxu0 %v59
    %v178 = vpop.f32.mrb[0].mxu0
    %v179 = vadd.f32 0.0, %v178
    %v180 = vpop.f32.mrb[0].mxu0
    %181 = vmatprep.mubr.f32.mxu0 0.0
    %182 = vmatmul.mubr.f32.gmra.mrb[0].mxu0 %v62
    %v183 = vpop.f32.mrb[0].mxu0
    %v184 = vadd.f32 0.0, %v183
    %v185 = vpop.f32.mrb[0].mxu0
    %186 = vdwg.mxu0
    %187 = vmatprep.subr.mxu0 0.0
    %188 = vmatpush1.xpose.msra.mxu0 %v23
    %189 = vmatprep.subr.mxu0 0.0
    %190 = vmatpush1.xpose.msra.mxu0 %v24
    %191 = vmatprep.subr.mxu0 0.0
    %192 = vmatpush1.xpose.msra.mxu0 %v25
    %193 = vmatprep.subr.mxu0 0.0
    %194 = vmatpush1.xpose.msra.mxu0 %v26
    %195 = vmatprep.subr.mxu0 0.0
    %196 = vmatpush1.xpose.msra.mxu0 %v27
    %197 = vmatprep.subr.mxu0 0.0
    %198 = vmatpush1.xpose.msra.mxu0 %v28
    %199 = vmatprep.subr.mxu0 0.0
    %200 = vmatpush1.xpose.msra.mxu0 %v29
    %201 = vmatprep.subr.mxu0 0.0
    %202 = vmatpush1.xpose.msra.mxu0 %v30
    %203 = vmatprep.subr.mxu0 0.0
    %204 = vmatpush1.xpose.msra.mxu0 %v31
    %205 = vmatprep.subr.mxu0 0.0
    %206 = vmatpush1.xpose.msra.mxu0 %v32
    %207 = vmatprep.subr.mxu0 0.0
    %208 = vmatpush1.xpose.msra.mxu0 %v33
    %209 = vmatprep.subr.mxu0 0.0
    %210 = vmatpush1.xpose.msra.mxu0 %v34
    %211 = vmatprep.subr.mxu0 0.0
    %212 = vmatpush1.xpose.msra.mxu0 %v35
    %213 = vmatprep.subr.mxu0 0.0
    %214 = vmatpush1.xpose.msra.mxu0 %v36
    %215 = vmatprep.subr.mxu0 0.0
    %216 = vmatpush1.xpose.msra.mxu0 %v37
    %217 = vmatprep.subr.mxu0 0.0
    %218 = vmatpush1.xpose.msra.mxu0 %v38
    %219 = vmatprep.subr.mxu0 0.0
    %220 = vmatpush1.xpose.msra.mxu0 0.0
    %221 = vmatprep.subr.mxu0 0.0
    %222 = vmatpush1.xpose.msra.mxu0 0.0
    %223 = vmatprep.subr.mxu0 0.0
    %224 = vmatpush1.xpose.msra.mxu0 0.0
    %225 = vmatprep.subr.mxu0 0.0
    %226 = vmatpush1.xpose.msra.mxu0 0.0
    %227 = vmatprep.subr.mxu0 0.0
    %228 = vmatpush1.xpose.msra.mxu0 0.0
    %229 = vmatprep.subr.mxu0 0.0
    %230 = vmatpush1.xpose.msra.mxu0 0.0
    %231 = vmatprep.subr.mxu0 0.0
    %232 = vmatpush1.xpose.msra.mxu0 0.0
    %233 = vmatprep.subr.mxu0 0.0
    %234 = vmatpush1.xpose.msra.mxu0 0.0
    %235 = vmatprep.subr.mxu0 0.0
    %236 = vmatpush1.xpose.msra.mxu0 0.0
    %237 = vmatprep.subr.mxu0 0.0
    %238 = vmatpush1.xpose.msra.mxu0 0.0
    %239 = vmatprep.subr.mxu0 0.0
    %240 = vmatpush1.xpose.msra.mxu0 0.0
    %241 = vmatprep.subr.mxu0 0.0
    %242 = vmatpush1.xpose.msra.mxu0 0.0
    %243 = vmatprep.subr.mxu0 0.0
    %244 = vmatpush1.xpose.msra.mxu0 0.0
    %245 = vmatprep.subr.mxu0 0.0
    %246 = vmatpush1.xpose.msra.mxu0 0.0
    %247 = vmatprep.subr.mxu0 0.0
    %248 = vmatpush1.xpose.msra.mxu0 0.0
    %249 = vmatprep.subr.mxu0 0.0
    %250 = vmatpush1.xpose.msra.mxu0 0.0
    %251 = vmatprep.mubr.f32.mxu0 0.0
    %252 = vmatmul.mubr.f32.gmra.mrb[0].mxu0 %v21
    %v253 = vpop.f32.mrb[0].mxu0
    %v254 = vadd.f32 %v179, %v253
    %v255 = vpop.f32.mrb[0].mxu0
    %256 = vmatprep.mubr.f32.mxu0 0.0
    %257 = vmatmul.mubr.f32.gmra.mrb[0].mxu0 %v22
    %v258 = vpop.f32.mrb[0].mxu0
    %v259 = vadd.f32 %v184, %v258
    %v260 = vpop.f32.mrb[0].mxu0
    %261 = vdwg.mxu0
    %v262 = vld [vmem:[%s4] sm:$0x1]
    %v264 = vlaneseq
    %v265 = vshrl.u32 %v264, 7
    %v266 = vsub.s32 0, %v265
    %v267 = vrot.slane %v262, %v266
    %v269 = vadd.f32 %v254, %v267
    %v270 = vadd.f32 %v259, %v267
    %271 = vst [vmem:[#allocation2] sm:$0xff] %v269
    %272 = vst [vmem:[#allocation2 + $0x8] sm:$0xff] %v270
    // Predicated region
    $region22: #{tpu_custom_call.1} parent=1 // pred_check
      _
    $region23: #{tpu_custom_call.1} parent=1 // pred_check_branch
      %274 = sbr.rel (0) target = $region25
    $region24: #{tpu_custom_call.1} parent=1 // pred_region
      %s276 = ssub.s32 256, 256
      %277 = vsyncadd [#allocation3], %s276
      %s278 = sshll.u32 [#allocation2], 4
      %s279 = int_to_ptr.vmem [resolvable:$true] %s278
      %284 = dma.vmem_to_hbm [thread:$0]  %s279, 256, %s5, [#allocation3], 128, 128, 8
    $region25: #{tpu_custom_call.1} parent=1 // pred_fallthru
      _
    // Predicated region
    $region26: #{tpu_custom_call.1} parent=1 // pred_check
      _
    $region27: #{tpu_custom_call.1} parent=1 // pred_check_branch
      %286 = sbr.rel (0) target = $region29
    $region28: #{tpu_custom_call.1} parent=1 // pred_region
      %287 = dma.done [#allocation3], 256
    $region29: #{tpu_custom_call.1} parent=1 // pred_fallthru
      _
    %288 = vsyncpa [#allocation3], 1

</llo_original>
